<compile_context>
chip_gen: v7x
topology: tpu7x:2x2x1
jax: 0.10.0
libtpu: 0.0.40
codegen_flags: <defaults>
</compile_context>

<pallas_src>
import numpy as np

import jax
import jax.numpy as jnp
from jax.experimental import pallas as pl
from jax.experimental.pallas import tpu as pltpu


def _proj_kernel(x_ref, w_ref, bp_ref, o_ref, acc_ref):
    """Computes one (TM, E) output tile; K (=P) is reduced over grid axis 1."""
    k = pl.program_id(1)

    @pl.when(k == 0)
    def _():
        acc_ref[...] = jnp.zeros_like(acc_ref)

    acc_ref[...] += jnp.dot(x_ref[...], w_ref[...],
                            preferred_element_type=jnp.float32)

    @pl.when(k == pl.num_programs(1) - 1)
    def _():
        o_ref[...] = (acc_ref[...] + bp_ref[...]).astype(o_ref.dtype)


def _rearrange_patches(x, h, w, s1, s2, dtype):
    """'b c (h s1) (w s2) -> (b h w) (s1 s2 c)'."""
    B, C, _, _ = x.shape
    N, P = h * w, s1 * s2 * C
    xf = x.astype(dtype)
    if C == 1 and (w == 1 or s1 == 1):
        # Layout-preserving: a pure reshape, no HBM round trip.
        return xf.reshape(B * N, P)
    xr = xf.reshape(B, C, h, s1, w, s2)
    xr = jnp.transpose(xr, (0, 2, 4, 3, 5, 1))      # (b, h, w, s1, s2, c)
    return xr.reshape(B * N, P)


def patch_embedding_linear(x, weight, bias, cls_token, positions, *, s1, s2,
                           compute_dtype=jnp.float32, out_dtype=jnp.float32,
                           tm=256, tk=512):
    """Forward of PatchEmbedding_Linear.

    x:         (B, C, h*s1, w*s2)
    weight:    (E, P)   torch nn.Linear weight, P = s1*s2*C
    bias:      (E,)
    cls_token: (1, 1, E)
    positions: (1, 1, E)
    returns:   (B, h*w + 1, E) in `out_dtype`
    """
    B, C, H, W = x.shape
    assert H % s1 == 0 and W % s2 == 0, (H, W, s1, s2)
    h, w = H // s1, W // s2
    N = h * w
    P = s1 * s2 * C
    E = weight.shape[0]
    M = B * N

    patches = _rearrange_patches(x, h, w, s1, s2, compute_dtype)     # (M, P)
    w_t = weight.astype(compute_dtype).T                             # (P, E)
    # bias + positions folded into a single (1, E) vector -> one add per tile.
    bias_pos = (bias.astype(jnp.float32)
                + positions.reshape(-1).astype(jnp.float32)).reshape(1, E)

    # ---- tile sizes ------------------------------------------------------
    TM = M if M <= tm else tm          # tm is a multiple of 8 (default 256)
    TK = P if P <= tk else tk          # tk is a multiple of 128 (default 512)
    if P > TK and P % TK:
        # Zero-pad K so no grid step feeds uninitialized VMEM into the MXU.
        pad = TK - P % TK
        patches = jnp.pad(patches, ((0, 0), (0, pad)))
        w_t = jnp.pad(w_t, ((0, pad), (0, 0)))
    Kp = patches.shape[1]
    nm = pl.cdiv(M, TM)                # partial last M block: writes are masked
    nk = Kp // TK

    in_b = np.dtype(compute_dtype).itemsize
    out_b = np.dtype(out_dtype).itemsize
    vmem_need = (2 * TM * TK * in_b        # double-buffered x tiles
                 + 2 * TK * E * in_b       # double-buffered weight tiles
                 + 2 * TM * E * out_b      # double-buffered output tiles
                 + TM * E * 4              # f32 accumulator scratch
                 + 4 * E * 4)              # bias + positions
    vmem_limit = int(min(max(2 * vmem_need, 8 * 1024 * 1024), 64 * 1024 * 1024))

    proj = pl.pallas_call(
        _proj_kernel,
        out_shape=jax.ShapeDtypeStruct((M, E), out_dtype),
        grid_spec=pltpu.PrefetchScalarGridSpec(
            num_scalar_prefetch=0,
            grid=(nm, nk),
            in_specs=[
                pl.BlockSpec((TM, TK), lambda i, k: (i, k)),   # x tile
                pl.BlockSpec((TK, E), lambda i, k: (k, 0)),    # weight tile
                pl.BlockSpec((1, E), lambda i, k: (0, 0)),     # bias+pos
            ],
            out_specs=pl.BlockSpec((TM, E), lambda i, k: (i, 0)),
            scratch_shapes=[pltpu.VMEM((TM, E), jnp.float32)],
        ),
        compiler_params=pltpu.CompilerParams(
            dimension_semantics=("parallel", "arbitrary"),
            vmem_limit_bytes=vmem_limit,
        ),
        cost_estimate=pl.CostEstimate(
            flops=2 * M * Kp * E,
            transcendentals=0,
            bytes_accessed=(M * Kp + Kp * E) * in_b + M * E * out_b + E * 4,
        ),
    )(patches, w_t, bias_pos)

    proj = proj.reshape(B, N, E)
    # cls row: cls_token broadcast over batch; the global `+ positions` applies
    # to it too, so fold it here (tiny (B, 1, E) op).
    cls = (cls_token.reshape(1, 1, E).astype(jnp.float32)
           + positions.reshape(1, 1, E).astype(jnp.float32)).astype(out_dtype)
    cls = jnp.broadcast_to(cls, (B, 1, E))
    return jnp.concatenate([cls, proj], axis=1)                   # (B, N+1, E)


if __name__ == "__main__":
    # Small config consistent with the module: C=1, Linear in_features = s1*s2*C.
    B, C = 2, 1
    s1, s2 = 16, 16        # patch height / width
    h, w = 4, 8            # patches along H / W  -> N = 32 per image
    E = 32                 # emb_size

    key = jax.random.PRNGKey(0)
    kx, kw, kb, kc, kp = jax.random.split(key, 5)

    x = jax.random.normal(kx, (B, C, h * s1, w * s2), dtype=jnp.float32)
    P = s1 * s2 * C
    weight = jax.random.normal(kw, (E, P), dtype=jnp.float32) * 0.02   # nn.Linear weight (E, P)
    bias = jax.random.normal(kb, (E,), dtype=jnp.float32) * 0.02
    cls_token = jax.random.normal(kc, (1, 1, E), dtype=jnp.float32)
    positions = jax.random.normal(kp, (1, 1, E), dtype=jnp.float32)

    # Small tiles so the demo actually exercises the (M, K) grid: nm = 2, nk = 2.
    out = patch_embedding_linear(x, weight, bias, cls_token, positions,
                                 s1=s1, s2=s2, tm=32, tk=128)
    out = jax.block_until_ready(out)

    # Pure-JAX reference of the PyTorch semantics.
    xr = (x.reshape(B, C, h, s1, w, s2)
           .transpose(0, 2, 4, 3, 5, 1)
           .reshape(B, h * w, P))
    ref_proj = jnp.einsum("bnp,ep->bne", xr, weight,
                          precision=jax.lax.Precision.HIGHEST) + bias
    ref_cls = jnp.broadcast_to(cls_token, (B, 1, E))
    ref = jnp.concatenate([ref_cls, ref_proj], axis=1) + positions

    assert out.shape == (B, h * w + 1, E), out.shape
    assert jnp.allclose(out, ref, atol=2e-3, rtol=2e-3), \
        float(jnp.max(jnp.abs(out - ref)))

    # bf16-input path (recommended for production: halves HBM traffic, MXU at
    # bf16 rate; f32 accumulation keeps accuracy at bf16 input-rounding level).
    out_bf16 = patch_embedding_linear(
        x, weight, bias, cls_token, positions, s1=s1, s2=s2,
        compute_dtype=jnp.bfloat16, out_dtype=jnp.bfloat16, tm=32, tk=128)
    out_bf16 = jax.block_until_ready(out_bf16)
    assert out_bf16.shape == (B, h * w + 1, E), out_bf16.shape
    assert jnp.allclose(out_bf16.astype(jnp.float32), ref, atol=1e-1, rtol=1e-1)

    print("KERNEL_OK")
</pallas_src>

<mosaic_0001>
module attributes {stable_mosaic.version = 11 : i64} {
  func.func @_proj_kernel(%arg0: i32, %arg1: i32, %arg2: memref<32x128xf32, #tpu.memory_space<vmem>>, %arg3: memref<128x32xf32, #tpu.memory_space<vmem>>, %arg4: memref<1x32xf32, #tpu.memory_space<vmem>>, %arg5: memref<32x32xf32, #tpu.memory_space<vmem>>, %arg6: memref<32x32xf32, #tpu.memory_space<vmem>>) attributes {dimension_semantics = [#tpu.dimension_semantics<parallel>, #tpu.dimension_semantics<arbitrary>], iteration_bounds = array<i64: 2, 2>, scalar_prefetch = 0 : i64, scratch_operands = 1 : i64, tpu.core_type = #tpu.core_type<tc>, window_params = [{transform_indices = @transform_0, window_bounds = array<i64: 32, 128>}, {transform_indices = @transform_1, window_bounds = array<i64: 128, 32>}, {pipeline_mode = #tpu.pipeline_mode<synchronous>, transform_indices = @transform_2, window_bounds = array<i64: 1, 32>}, {transform_indices = @transform_3, window_bounds = array<i64: 32, 32>}]} {
    %c0_i32 = arith.constant 0 : i32
    %0 = arith.cmpi eq, %arg1, %c0_i32 : i32
    %1 = arith.extui %0 : i1 to i32
    %c0_i32_0 = arith.constant 0 : i32
    %2 = arith.cmpi ne, %1, %c0_i32_0 : i32
    scf.if %2 {
      %cst_9 = arith.constant 0.000000e+00 : f32
      %12 = vector.broadcast %cst_9 : f32 to vector<32x32xf32>
      %c0_10 = arith.constant 0 : index
      %c0_11 = arith.constant 0 : index
      %13 = vector.load %arg6[%c0_10, %c0_11] : memref<32x32xf32, #tpu.memory_space<vmem>>, vector<32x32xf32>
      tpu.vector_store %arg6[%c0_10, %c0_11], %12 {strides = array<i32>} : memref<32x32xf32, #tpu.memory_space<vmem>>, vector<32x32xf32>,
    } else {
    }
    %c0 = arith.constant 0 : index
    %c0_1 = arith.constant 0 : index
    %3 = vector.load %arg6[%c0, %c0_1] : memref<32x32xf32, #tpu.memory_space<vmem>>, vector<32x32xf32>
    %c0_2 = arith.constant 0 : index
    %c0_3 = arith.constant 0 : index
    %4 = vector.load %arg2[%c0_2, %c0_3] : memref<32x128xf32, #tpu.memory_space<vmem>>, vector<32x128xf32>
    %c0_4 = arith.constant 0 : index
    %c0_5 = arith.constant 0 : index
    %5 = vector.load %arg3[%c0_4, %c0_5] : memref<128x32xf32, #tpu.memory_space<vmem>>, vector<128x32xf32>
    %cst = arith.constant dense<0.000000e+00> : vector<32x32xf32>
    %6 = tpu.matmul %4, %5, %cst {dimension_numbers = #tpu.dot_dimension_numbers<[1], [0], [0], [1], [0, 0, 1, 1], [], []>} : vector<32x128xf32>, vector<128x32xf32>, vector<32x32xf32> -> vector<32x32xf32>
    %7 = arith.addf %3, %6 : vector<32x32xf32>
    %c0_6 = arith.constant 0 : index
    %c0_7 = arith.constant 0 : index
    %8 = vector.load %arg6[%c0_6, %c0_7] : memref<32x32xf32, #tpu.memory_space<vmem>>, vector<32x32xf32>
    tpu.vector_store %arg6[%c0_6, %c0_7], %7 {strides = array<i32>} : memref<32x32xf32, #tpu.memory_space<vmem>>, vector<32x32xf32>,
    %c1_i32 = arith.constant 1 : i32
    %9 = arith.cmpi eq, %arg1, %c1_i32 : i32
    %10 = arith.extui %9 : i1 to i32
    %c0_i32_8 = arith.constant 0 : i32
    %11 = arith.cmpi ne, %10, %c0_i32_8 : i32
    scf.if %11 {
      %c0_9 = arith.constant 0 : index
      %c0_10 = arith.constant 0 : index
      %12 = vector.load %arg6[%c0_9, %c0_10] : memref<32x32xf32, #tpu.memory_space<vmem>>, vector<32x32xf32>
      %c0_11 = arith.constant 0 : index
      %c0_12 = arith.constant 0 : index
      %13 = vector.load %arg4[%c0_11, %c0_12] : memref<1x32xf32, #tpu.memory_space<vmem>>, vector<1x32xf32>
      %14 = vector.broadcast %13 : vector<1x32xf32> to vector<32x32xf32>
      %15 = arith.addf %12, %14 : vector<32x32xf32>
      %c0_13 = arith.constant 0 : index
      %c0_14 = arith.constant 0 : index
      %16 = vector.load %arg5[%c0_13, %c0_14] : memref<32x32xf32, #tpu.memory_space<vmem>>, vector<32x32xf32>
      tpu.vector_store %arg5[%c0_13, %c0_14], %15 {strides = array<i32>} : memref<32x32xf32, #tpu.memory_space<vmem>>, vector<32x32xf32>,
    } else {
    }
    return
  }
  func.func @transform_0(%arg0: i32, %arg1: i32) -> (i32, i32) {
    %c0_i32 = arith.constant 0 : i32
    return %arg0, %arg1 : i32, i32
  }
  func.func @transform_1(%arg0: i32, %arg1: i32) -> (i32, i32) {
    %c0_i32 = arith.constant 0 : i32
    %c0_i32_0 = arith.constant 0 : i32
    return %arg1, %c0_i32 : i32, i32
  }
  func.func @transform_2(%arg0: i32, %arg1: i32) -> (i32, i32) {
    %c0_i32 = arith.constant 0 : i32
    %c0_i32_0 = arith.constant 0 : i32
    %c0_i32_1 = arith.constant 0 : i32
    return %c0_i32, %c0_i32_0 : i32, i32
  }
  func.func @transform_3(%arg0: i32, %arg1: i32) -> (i32, i32) {
    %c0_i32 = arith.constant 0 : i32
    %c0_i32_0 = arith.constant 0 : i32
    return %arg0, %c0_i32 : i32, i32
  }
}

</mosaic_0001>

<llo_original>
// kernel: tpu_custom_call.1
$region0: #{tpu_custom_call.1}
  #allocation0 [shape = 'u32[]', space=smem, size = 0x4, offset = 0x4, fixed_abs, tag = 'smem constant byte address 0x4 - core index']
  #allocation1 [shape = 'u32[144,128]{1,0:T(1,128)}', space=vmem, size = 0x12000, scoped, tag = 'internal scratch']
  #allocation2 [shape = 'f32[32,32]{1,0:T(8,128)}', space=vmem, size = 0x4000, scoped, tag = 'scratch operand']
  %s0 = inlined_call_operand.vmem [shape: f32[64,256], index: 0, kind: input, shape index: {}]
  %s1 = inlined_call_operand.vmem [shape: f32[256,32], index: 1, kind: input, shape index: {}]
  %s2 = inlined_call_operand.vmem [shape: f32[1,32], index: 2, kind: input, shape index: {}]
  %s3 = inlined_call_operand.vmem [shape: f32[64,32], index: 3, kind: output, shape index: {}]
  %s4 = sld [smem:[#allocation0]]
  $region91: #{tpu_custom_call.1} parent=0
    _
  %s6 = ssub.s32 1, %s4
  %s7 = scalar_select 0, %s6, %s4
  $region1: #{tpu_custom_call.1} parent=0
    #allocation3 [shape = 'u8[32768]{0}', space=vmem, size = 0x8000, scoped, tag = 'input window, operand 0']
    loop: start=0, step=1, limit=6
    $region2: #{tpu_custom_call.1} parent=1 // loop_pre_header
      _
    $region3: #{tpu_custom_call.1} parent=1 // loop_header
      %s9 = sphi 0, %s13
      %p10 = scmp.ge.s32.totalorder %s9, 6
      %s16 = sphi 0, %s28
      %s17 = sphi 0, %s24
      %s18 = sphi 0, %s16
      %s19 = sphi 0, %s17
      %s20 = sphi 0, %s18
      %s21 = sphi 0, %s19
      %s33 = sphi 0, %s35
      %s36 = sphi 0, %s33
      %s37 = sphi 0, %s36
      %s53 = sphi 0, %s37
      %s59 = sphi 0, %s61
      %s62 = sphi 0, %s59
      %s63 = sphi 0, %s62
      %s79 = sphi 0, %s63
      %s83 = sphi 0, %s83
      %s85 = sphi 0, %s83
      %s86 = sphi 0, %s85
      %s100 = sphi 0, %s86
      %s106 = sphi 0, %s108
      %s109 = sphi 0, %s106
      %s110 = sphi 0, %s109
      %s126 = sphi 0, %s110
    $region4: #{tpu_custom_call.1} parent=1 // loop_header_branch
      %12 = sbr.rel (%p10) target = $region8
    $region5: #{tpu_custom_call.1} parent=1 // loop_body
      %s14 = ssub.s32 %s9, 1
      %s15 = ssub.s32 %s9, 2
      %s22 = sadd.s32 1, %s17
      %p23 = scmp.ge.s32.totalorder %s22, 2
      %s24 = scalar_select %p23, 0, %s22
      %s25 = sadd.s32 1, %s16
      %s26 = scalar_select %p23, %s25, %s16
      %p27 = scmp.ge.s32.totalorder %s26, 2
      %s28 = scalar_select %p27, 0, %s26
      %s29 = ssub.s32 %s16, %s28
      %s30 = ssub.s32 %s17, %s24
      %s31 = sor.u32 %s29, %s30
      %p32 = scmp.eq.s32.totalorder %s31, 0
      %s34 = sadd.s32 %s33, 1
      %s35 = scalar_select %p32, %s33, %s34
      %p38 = pneg %p32
      %p39 = scmp.eq.s32.totalorder %s9, 3
      %p40 = por %p38, %p39
      %p41 = scmp.ne.s32.totalorder %s33, %s36
      %p42 = scmp.eq.s32.totalorder %s9, 0
      %p43 = por %p41, %p42
      %p44 = scmp.ne.s32.totalorder %s33, %s36
      %p45 = scmp.eq.s32.totalorder %s14, 3
      %p46 = por %p44, %p45
      %p47 = scmp.ne.s32.totalorder %s36, %s37
      %p48 = scmp.eq.s32.totalorder %s14, 0
      %p49 = por %p47, %p48
      %p50 = scmp.ne.s32.totalorder %s36, %s37
      %p51 = scmp.eq.s32.totalorder %s15, 3
      %p52 = por %p50, %p51
      %p54 = scmp.ne.s32.totalorder %s37, %s53
      %p55 = scmp.eq.s32.totalorder %s15, 0
      %p56 = por %p54, %p55
      %s57 = ssub.s32 %s17, %s24
      %p58 = scmp.eq.s32.totalorder %s57, 0
      %s60 = sadd.s32 %s59, 1
      %s61 = scalar_select %p58, %s59, %s60
      %p64 = pneg %p58
      %p65 = scmp.eq.s32.totalorder %s9, 3
      %p66 = por %p64, %p65
      %p67 = scmp.ne.s32.totalorder %s59, %s62
      %p68 = scmp.eq.s32.totalorder %s9, 0
      %p69 = por %p67, %p68
      %p70 = scmp.ne.s32.totalorder %s59, %s62
      %p71 = scmp.eq.s32.totalorder %s14, 3
      %p72 = por %p70, %p71
      %p73 = scmp.ne.s32.totalorder %s62, %s63
      %p74 = scmp.eq.s32.totalorder %s14, 0
      %p75 = por %p73, %p74
      %p76 = scmp.ne.s32.totalorder %s62, %s63
      %p77 = scmp.eq.s32.totalorder %s15, 3
      %p78 = por %p76, %p77
      %p80 = scmp.ne.s32.totalorder %s63, %s79
      %p81 = scmp.eq.s32.totalorder %s15, 0
      %p82 = por %p80, %p81
      %s84 = sadd.s32 %s83, 1
      %p87 = scmp.eq.s32.totalorder %s9, 3
      %p88 = scmp.ne.s32.totalorder %s83, %s85
      %p89 = scmp.eq.s32.totalorder %s9, 0
      %p90 = por %p88, %p89
      %p91 = scmp.ne.s32.totalorder %s83, %s85
      %p92 = scmp.eq.s32.totalorder %s14, 3
      %p93 = por %p91, %p92
      %p94 = scmp.ne.s32.totalorder %s85, %s86
      %p95 = scmp.eq.s32.totalorder %s14, 0
      %p96 = por %p94, %p95
      %p97 = scmp.ne.s32.totalorder %s85, %s86
      %p98 = scmp.eq.s32.totalorder %s15, 3
      %p99 = por %p97, %p98
      %p101 = scmp.ne.s32.totalorder %s86, %s100
      %p102 = scmp.eq.s32.totalorder %s15, 0
      %p103 = por %p101, %p102
      %s104 = ssub.s32 %s16, %s28
      %p105 = scmp.eq.s32.totalorder %s104, 0
      %s107 = sadd.s32 %s106, 1
      %s108 = scalar_select %p105, %s106, %s107
      %p111 = pneg %p105
      %p112 = scmp.eq.s32.totalorder %s9, 3
      %p113 = por %p111, %p112
      %p114 = scmp.ne.s32.totalorder %s106, %s109
      %p115 = scmp.eq.s32.totalorder %s9, 0
      %p116 = por %p114, %p115
      %p117 = scmp.ne.s32.totalorder %s106, %s109
      %p118 = scmp.eq.s32.totalorder %s14, 3
      %p119 = por %p117, %p118
      %p120 = scmp.ne.s32.totalorder %s109, %s110
      %p121 = scmp.eq.s32.totalorder %s14, 0
      %p122 = por %p120, %p121
      %p123 = scmp.ne.s32.totalorder %s109, %s110
      %p124 = scmp.eq.s32.totalorder %s15, 3
      %p125 = por %p123, %p124
      %p127 = scmp.ne.s32.totalorder %s110, %s126
      %p128 = scmp.eq.s32.totalorder %s15, 0
      %p129 = por %p127, %p128
      %p130 = scmp.le.s32.totalorder 1, %s9
      %p131 = scmp.lt.s32.totalorder %s9, 5
      %p132 = pnand %p130, %p131
      %p133 = pneg %p132
      // Predicated region
      $region9: #{tpu_custom_call.1} parent=5 // pred_check
        _
      $region10: #{tpu_custom_call.1} parent=5 // pred_check_branch
        %135 = sbr.rel (%p132) target = $region12
      $region11: #{tpu_custom_call.1} parent=5 // pred_region
        %s136 = ssub.s32 %s9, 1
        // Predicated region
        $region13: #{tpu_custom_call.1} parent=11 // pred_check
          %p137 = pneg %p96
        $region14: #{tpu_custom_call.1} parent=11 // pred_check_branch
          %139 = sbr.rel (%p137) target = $region16
        $region15: #{tpu_custom_call.1} parent=11 // pred_region
          _
        $region16: #{tpu_custom_call.1} parent=11 // pred_fallthru
          _
      $region12: #{tpu_custom_call.1} parent=5 // pred_fallthru
        _
      %p140 = scmp.lt.s32.totalorder %s9, 4
      // Predicated region
      $region17: #{tpu_custom_call.1} parent=5 // pred_check
        %p141 = pneg %p140
      $region18: #{tpu_custom_call.1} parent=5 // pred_check_branch
        %143 = sbr.rel (%p141) target = $region20
      $region19: #{tpu_custom_call.1} parent=5 // pred_region
        // Predicated region
        $region21: #{tpu_custom_call.1} parent=19 // pred_check
          %p144 = pneg %p43
        $region22: #{tpu_custom_call.1} parent=19 // pred_check_branch
          %146 = sbr.rel (%p144) target = $region24
        $region23: #{tpu_custom_call.1} parent=19 // pred_region
          %s147 = sand.u32 %s33, 1
          %s148 = sand.u32 %s33, 1
          %s149 = smul.addr %s148, 32
          %s150 = scalar_lea.vmem [#allocation3], %s149
          %s151 = smul.u32 4, %s16
          %s152 = smul.addr %s151, 2
          %s153 = sadd.s32 %s17, %s152
          %s154 = smul.addr %s153, 8
          %s155 = scalar_lea.vmem %s0, %s154
          // Predicated region
          $region25: #{tpu_custom_call.1} parent=23 // pred_check
            _
          $region26: #{tpu_custom_call.1} parent=23 // pred_check_branch
            %157 = sbr.rel (0) target = $region28
          $region27: #{tpu_custom_call.1} parent=23 // pred_region
            // Predicated region
            $region29: #{tpu_custom_call.1} parent=27 // pred_check
              _
            $region30: #{tpu_custom_call.1} parent=27 // pred_check_branch
              %159 = sbr.rel (0) target = $region32
            $region31: #{tpu_custom_call.1} parent=27 // pred_region
              // Predicated region
              $region44: #{tpu_custom_call.1} parent=31 // pred_check
                _
              $region45: #{tpu_custom_call.1} parent=31 // pred_check_branch
                %180 = sbr.rel (0) target = $region47
              $region46: #{tpu_custom_call.1} parent=31 // pred_region
                loop: start=0, step=1, limit=1
                $region48: #{tpu_custom_call.1} parent=46 // loop_pre_header
                  _
                $region49: #{tpu_custom_call.1} parent=46 // loop_header
                  %s182 = sphi 0, %s186
                  %p183 = scmp.ge.s32.totalorder %s182, 1
                  %s187 = sphi %s155, %s155
                  %s188 = sphi %s150, %s150
                $region50: #{tpu_custom_call.1} parent=46 // loop_header_branch
                  %185 = sbr.rel (%p183) target = $region54
                $region51: #{tpu_custom_call.1} parent=46 // loop_body
                  %v189 = vld [vmem:[%s187] sm:$0xff]
                  %190 = vst [vmem:[%s188] sm:$0xff] %v189
                  %v191 = vld [vmem:[%s187 + $0x10] sm:$0xff]
                  %192 = vst [vmem:[%s188 + $0x8] sm:$0xff] %v191
                  %v193 = vld [vmem:[%s187 + $0x20] sm:$0xff]
                  %194 = vst [vmem:[%s188 + $0x10] sm:$0xff] %v193
                  %v195 = vld [vmem:[%s187 + $0x30] sm:$0xff]
                  %196 = vst [vmem:[%s188 + $0x18] sm:$0xff] %v195
                $region52: #{tpu_custom_call.1} parent=46 // loop_footer
                  %s186 = sadd.s32 1, %s182
                $region53: #{tpu_custom_call.1} parent=46 // loop_footer_branch
                  %181 = sbr.rel target = $region49
                $region54: #{tpu_custom_call.1} parent=46 // loop_exit
                  _
              $region47: #{tpu_custom_call.1} parent=31 // pred_fallthru
                _
              // Predicated region
              $region55: #{tpu_custom_call.1} parent=31 // pred_check
                _
              $region56: #{tpu_custom_call.1} parent=31 // pred_check_branch
                %198 = sbr.rel target = $region58
              $region57: #{tpu_custom_call.1} parent=31 // pred_region
                _
              $region58: #{tpu_custom_call.1} parent=31 // pred_fallthru
                _
            $region32: #{tpu_custom_call.1} parent=27 // pred_fallthru
              _
            // Predicated region
            $region33: #{tpu_custom_call.1} parent=27 // pred_check
              _
            $region34: #{tpu_custom_call.1} parent=27 // pred_check_branch
              %161 = sbr.rel target = $region36
            $region35: #{tpu_custom_call.1} parent=27 // pred_region
              loop: start=0, step=1, limit=1
              $region37: #{tpu_custom_call.1} parent=35 // loop_pre_header
                _
              $region38: #{tpu_custom_call.1} parent=35 // loop_header
                %s164 = sphi 0, %s168
                %p165 = scmp.ge.s32.totalorder %s164, 1
                %s169 = sphi %s155, %s155
                %s170 = sphi %s150, %s150
              $region39: #{tpu_custom_call.1} parent=35 // loop_header_branch
                %167 = sbr.rel (%p165) target = $region43
              $region40: #{tpu_custom_call.1} parent=35 // loop_body
                %v171 = vld [vmem:[%s169] sm:$0xff]
                %172 = vst [vmem:[%s170] sm:$0xff] %v171
                %v173 = vld [vmem:[%s169 + $0x10] sm:$0xff]
                %174 = vst [vmem:[%s170 + $0x8] sm:$0xff] %v173
                %v175 = vld [vmem:[%s169 + $0x20] sm:$0xff]
                %176 = vst [vmem:[%s170 + $0x10] sm:$0xff] %v175
                %v177 = vld [vmem:[%s169 + $0x30] sm:$0xff]
                %178 = vst [vmem:[%s170 + $0x18] sm:$0xff] %v177
              $region41: #{tpu_custom_call.1} parent=35 // loop_footer
                %s168 = sadd.s32 1, %s164
              $region42: #{tpu_custom_call.1} parent=35 // loop_footer_branch
                %163 = sbr.rel target = $region38
              $region43: #{tpu_custom_call.1} parent=35 // loop_exit
                _
            $region36: #{tpu_custom_call.1} parent=27 // pred_fallthru
              _
          $region28: #{tpu_custom_call.1} parent=23 // pred_fallthru
            _
          %199 = vnop
        $region24: #{tpu_custom_call.1} parent=19 // pred_fallthru
          _
        // Predicated region
        $region59: #{tpu_custom_call.1} parent=19 // pred_check
          %p200 = pneg %p69
        $region60: #{tpu_custom_call.1} parent=19 // pred_check_branch
          %202 = sbr.rel (%p200) target = $region62
        $region61: #{tpu_custom_call.1} parent=19 // pred_region
          %s203 = smul.u32 16, %s17
          %p204 = scmp.lt.s32.totalorder %s203, 31
          %s205 = scalar_select %p204, %s203, 31
          %s206 = smul.addr %s205, 8
          %s207 = scalar_lea.vmem %s1, %s206
          %s208 = smul.u32 16, %s17
        $region62: #{tpu_custom_call.1} parent=19 // pred_fallthru
          _
      $region20: #{tpu_custom_call.1} parent=5 // pred_fallthru
        _
      %p209 = scmp.le.s32.totalorder 1, %s9
      %p210 = scmp.lt.s32.totalorder %s9, 5
      %p211 = pnand %p209, %p210
      %p212 = pneg %p211
      // Predicated region
      $region63: #{tpu_custom_call.1} parent=5 // pred_check
        _
      $region64: #{tpu_custom_call.1} parent=5 // pred_check_branch
        %214 = sbr.rel (%p211) target = $region66
      $region65: #{tpu_custom_call.1} parent=5 // pred_region
        %s215 = ssub.s32 %s9, 1
        %s216 = sand.u32 %s36, 1
        %s217 = sand.u32 %s36, 1
        %s218 = smul.addr %s217, 32
        %s219 = scalar_lea.vmem [#allocation3], %s218
        // Predicated region
        $region67: #{tpu_custom_call.1} parent=65 // pred_check
          %p220 = pneg %p49
        $region68: #{tpu_custom_call.1} parent=65 // pred_check_branch
          %222 = sbr.rel (%p220) target = $region70
        $region69: #{tpu_custom_call.1} parent=65 // pred_region
          _
        $region70: #{tpu_custom_call.1} parent=65 // pred_fallthru
          _
        %s223 = sand.u32 %s36, 1
        %s224 = sand.u32 %s36, 1
        %s225 = smul.addr %s224, 32
        %s226 = scalar_lea.vmem [#allocation3], %s225
        %p227 = pneg %p49
        %p228 = pneg %p46
        %s229 = smul.u32 16, %s19
        %p230 = scmp.lt.s32.totalorder %s229, 31
        %s231 = scalar_select %p230, %s229, 31
        %s232 = smul.addr %s231, 8
        %s233 = scalar_lea.vmem %s1, %s232
        %p234 = pneg %p75
        %p235 = pneg %p72
        %p236 = pneg %p96
        %p237 = pneg %p93
        %p238 = pneg %p122
        %p239 = pneg %p119
        %s240 = smul.u32 4, %s18
        %p241 = scmp.lt.s32.totalorder %s240, 7
        %s242 = scalar_select %p241, %s240, 7
        %s243 = smul.addr %s242, 8
        %s244 = scalar_lea.vmem %s3, %s243
        %s245 = smul.u32 4, %s18
        %s246 = smul.u32 16, %s19
        %p247 = scmp.lt.s32.totalorder %s246, 31
        %s248 = scalar_select %p247, %s246, 31
        %s249 = smul.addr %s248, 8
        %s250 = scalar_lea.vmem %s1, %s249
        %s251 = smul.u32 16, %s19
        %s252 = smul.u32 4, %s18
        %p253 = scmp.lt.s32.totalorder %s252, 7
        %s254 = scalar_select %p253, %s252, 7
        %s255 = smul.addr %s254, 8
        %s256 = scalar_lea.vmem %s3, %s255
        %s257 = smul.u32 4, %s18
        %p258 = scmp.eq.s32.totalorder %s19, 0
        // Predicated region
        $region71: #{tpu_custom_call.1} parent=65 // pred_check
          %p259 = pneg %p258
        $region72: #{tpu_custom_call.1} parent=65 // pred_check_branch
          %261 = sbr.rel (%p259) target = $region74
        $region73: #{tpu_custom_call.1} parent=65 // pred_region
          %vm262 = vcmask 261120
          %263 = vst.msk [vmem:[#allocation2] sm:$0xff] %vm262, 0.0
          %264 = vst.msk [vmem:[#allocation2 + $0x8] sm:$0xff] %vm262, 0.0
          %265 = vst.msk [vmem:[#allocation2 + $0x10] sm:$0xff] %vm262, 0.0
          %266 = vst.msk [vmem:[#allocation2 + $0x18] sm:$0xff] %vm262, 0.0
        $region74: #{tpu_custom_call.1} parent=65 // pred_fallthru
          _
        %v267 = vld [vmem:[#allocation2] sm:$0xff]
        %v268 = vld [vmem:[#allocation2 + $0x8] sm:$0xff]
        %v269 = vld [vmem:[#allocation2 + $0x10] sm:$0xff]
        %v270 = vld [vmem:[#allocation2 + $0x18] sm:$0xff]
        %v271 = vld [vmem:[%s219] sm:$0xff]
        %v272 = vld [vmem:[%s219 + $0x8] sm:$0xff]
        %v273 = vld [vmem:[%s219 + $0x10] sm:$0xff]
        %v274 = vld [vmem:[%s219 + $0x18] sm:$0xff]
        %v275 = vld [vmem:[%s250] sm:$0xff]
        %v276 = vld [vmem:[%s250 + $0x8] sm:$0xff]
        %v277 = vld [vmem:[%s250 + $0x10] sm:$0xff]
        %v278 = vld [vmem:[%s250 + $0x18] sm:$0xff]
        %v279 = vld [vmem:[%s250 + $0x20] sm:$0xff]
        %v280 = vld [vmem:[%s250 + $0x28] sm:$0xff]
        %v281 = vld [vmem:[%s250 + $0x30] sm:$0xff]
        %v282 = vld [vmem:[%s250 + $0x38] sm:$0xff]
        %v283 = vld [vmem:[%s250 + $0x40] sm:$0xff]
        %v284 = vld [vmem:[%s250 + $0x48] sm:$0xff]
        %v285 = vld [vmem:[%s250 + $0x50] sm:$0xff]
        %v286 = vld [vmem:[%s250 + $0x58] sm:$0xff]
        %v287 = vld [vmem:[%s250 + $0x60] sm:$0xff]
        %v288 = vld [vmem:[%s250 + $0x68] sm:$0xff]
        %v289 = vld [vmem:[%s250 + $0x70] sm:$0xff]
        %v290 = vld [vmem:[%s250 + $0x78] sm:$0xff]
        %291 = vmatprep.subr.mxu0 0.0
        %292 = vmatpush1.msra.mxu0 %v275
        %293 = vmatprep.subr.mxu0 0.0
        %294 = vmatpush1.msra.mxu0 %v276
        %295 = vmatprep.subr.mxu0 0.0
        %296 = vmatpush1.msra.mxu0 %v277
        %297 = vmatprep.subr.mxu0 0.0
        %298 = vmatpush1.msra.mxu0 %v278
        %299 = vmatprep.subr.mxu0 0.0
        %300 = vmatpush1.msra.mxu0 %v279
        %301 = vmatprep.subr.mxu0 0.0
        %302 = vmatpush1.msra.mxu0 %v280
        %303 = vmatprep.subr.mxu0 0.0
        %304 = vmatpush1.msra.mxu0 %v281
        %305 = vmatprep.subr.mxu0 0.0
        %306 = vmatpush1.msra.mxu0 %v282
        %307 = vmatprep.subr.mxu0 0.0
        %308 = vmatpush1.msra.mxu0 %v283
        %309 = vmatprep.subr.mxu0 0.0
        %310 = vmatpush1.msra.mxu0 %v284
        %311 = vmatprep.subr.mxu0 0.0
        %312 = vmatpush1.msra.mxu0 %v285
        %313 = vmatprep.subr.mxu0 0.0
        %314 = vmatpush1.msra.mxu0 %v286
        %315 = vmatprep.subr.mxu0 0.0
        %316 = vmatpush1.msra.mxu0 %v287
        %317 = vmatprep.subr.mxu0 0.0
        %318 = vmatpush1.msra.mxu0 %v288
        %319 = vmatprep.subr.mxu0 0.0
        %320 = vmatpush1.msra.mxu0 %v289
        %321 = vmatprep.subr.mxu0 0.0
        %322 = vmatpush1.msra.mxu0 %v290
        %323 = vmatprep.subr.mxu0 0.0
        %324 = vmatpush1.msra.mxu0 0.0
        %325 = vmatprep.subr.mxu0 0.0
        %326 = vmatpush1.msra.mxu0 0.0
        %327 = vmatprep.subr.mxu0 0.0
        %328 = vmatpush1.msra.mxu0 0.0
        %329 = vmatprep.subr.mxu0 0.0
        %330 = vmatpush1.msra.mxu0 0.0
        %331 = vmatprep.subr.mxu0 0.0
        %332 = vmatpush1.msra.mxu0 0.0
        %333 = vmatprep.subr.mxu0 0.0
        %334 = vmatpush1.msra.mxu0 0.0
        %335 = vmatprep.subr.mxu0 0.0
        %336 = vmatpush1.msra.mxu0 0.0
        %337 = vmatprep.subr.mxu0 0.0
        %338 = vmatpush1.msra.mxu0 0.0
        %339 = vmatprep.subr.mxu0 0.0
        %340 = vmatpush1.msra.mxu0 0.0
        %341 = vmatprep.subr.mxu0 0.0
        %342 = vmatpush1.msra.mxu0 0.0
        %343 = vmatprep.subr.mxu0 0.0
        %344 = vmatpush1.msra.mxu0 0.0
        %345 = vmatprep.subr.mxu0 0.0
        %346 = vmatpush1.msra.mxu0 0.0
        %347 = vmatprep.subr.mxu0 0.0
        %348 = vmatpush1.msra.mxu0 0.0
        %349 = vmatprep.subr.mxu0 0.0
        %350 = vmatpush1.msra.mxu0 0.0
        %351 = vmatprep.subr.mxu0 0.0
        %352 = vmatpush1.msra.mxu0 0.0
        %353 = vmatprep.subr.mxu0 0.0
        %354 = vmatpush1.msra.mxu0 0.0
        %355 = vmatprep.mubr.f32.mxu0 0.0
        %356 = vmatmul.mubr.f32.gmra.mrb[0].mxu0 %v271
        %v357 = vpop.f32.mrb[0].mxu0
        %v358 = vadd.f32 0.0, %v357
        %v359 = vpop.f32.mrb[0].mxu0
        %360 = vmatprep.mubr.f32.mxu0 0.0
        %361 = vmatmul.mubr.f32.gmra.mrb[0].mxu0 %v272
        %v362 = vpop.f32.mrb[0].mxu0
        %v363 = vadd.f32 0.0, %v362
        %v364 = vpop.f32.mrb[0].mxu0
        %365 = vmatprep.mubr.f32.mxu0 0.0
        %366 = vmatmul.mubr.f32.gmra.mrb[0].mxu0 %v273
        %v367 = vpop.f32.mrb[0].mxu0
        %v368 = vadd.f32 0.0, %v367
        %v369 = vpop.f32.mrb[0].mxu0
        %370 = vmatprep.mubr.f32.mxu0 0.0
        %371 = vmatmul.mubr.f32.gmra.mrb[0].mxu0 %v274
        %v372 = vpop.f32.mrb[0].mxu0
        %v373 = vadd.f32 0.0, %v372
        %v374 = vpop.f32.mrb[0].mxu0
        %375 = vdwg.mxu0
        %v376 = vadd.f32 %v267, %v358
        %v377 = vadd.f32 %v268, %v363
        %v378 = vadd.f32 %v269, %v368
        %v379 = vadd.f32 %v270, %v373
        %vm380 = vcmask 261120
        %381 = vst.msk [vmem:[#allocation2] sm:$0xff] %vm380, %v376
        %382 = vst.msk [vmem:[#allocation2 + $0x8] sm:$0xff] %vm380, %v377
        %383 = vst.msk [vmem:[#allocation2 + $0x10] sm:$0xff] %vm380, %v378
        %384 = vst.msk [vmem:[#allocation2 + $0x18] sm:$0xff] %vm380, %v379
        %p385 = scmp.eq.s32.totalorder %s19, 1
        // Predicated region
        $region75: #{tpu_custom_call.1} parent=65 // pred_check
          %p386 = pneg %p385
        $region76: #{tpu_custom_call.1} parent=65 // pred_check_branch
          %388 = sbr.rel (%p386) target = $region78
        $region77: #{tpu_custom_call.1} parent=65 // pred_region
          %v389 = vld [vmem:[#allocation2] sm:$0xff]
          %v390 = vld [vmem:[#allocation2 + $0x8] sm:$0xff]
          %v391 = vld [vmem:[#allocation2 + $0x10] sm:$0xff]
          %v392 = vld [vmem:[#allocation2 + $0x18] sm:$0xff]
          %v393 = vld [vmem:[%s2] sm:$0x1]
          %v395 = vlaneseq
          %v396 = vshrl.u32 %v395, 7
          %v397 = vsub.s32 0, %v396
          %v398 = vrot.slane %v393, %v397
          %v400 = vadd.f32 %v389, %v398
          %v401 = vadd.f32 %v390, %v398
          %v402 = vadd.f32 %v391, %v398
          %v403 = vadd.f32 %v392, %v398
          %404 = vst.msk [vmem:[%s256] sm:$0xff] %vm380, %v400
          %405 = vst.msk [vmem:[%s256 + $0x8] sm:$0xff] %vm380, %v401
          %406 = vst.msk [vmem:[%s256 + $0x10] sm:$0xff] %vm380, %v402
          %407 = vst.msk [vmem:[%s256 + $0x18] sm:$0xff] %vm380, %v403
        $region78: #{tpu_custom_call.1} parent=65 // pred_fallthru
          _
        %s408 = smul.u32 4, %s18
        %p409 = scmp.lt.s32.totalorder %s408, 7
        %s410 = scalar_select %p409, %s408, 7
        %s411 = smul.addr %s410, 8
        %s412 = scalar_lea.vmem %s3, %s411
        // Predicated region
        $region79: #{tpu_custom_call.1} parent=65 // pred_check
          %p413 = pneg %p119
        $region80: #{tpu_custom_call.1} parent=65 // pred_check_branch
          %415 = sbr.rel (%p413) target = $region82
        $region81: #{tpu_custom_call.1} parent=65 // pred_region
          %s416 = smul.u32 4, %s18
        $region82: #{tpu_custom_call.1} parent=65 // pred_fallthru
          _
      $region66: #{tpu_custom_call.1} parent=5 // pred_fallthru
        _
      %p417 = scmp.le.s32.totalorder 2, %s9
      // Predicated region
      $region83: #{tpu_custom_call.1} parent=5 // pred_check
        %p418 = pneg %p417
      $region84: #{tpu_custom_call.1} parent=5 // pred_check_branch
        %420 = sbr.rel (%p418) target = $region86
      $region85: #{tpu_custom_call.1} parent=5 // pred_region
        %s421 = ssub.s32 %s9, 2
        // Predicated region
        $region87: #{tpu_custom_call.1} parent=85 // pred_check
          %p422 = pneg %p125
        $region88: #{tpu_custom_call.1} parent=85 // pred_check_branch
          %424 = sbr.rel (%p422) target = $region90
        $region89: #{tpu_custom_call.1} parent=85 // pred_region
          %s425 = smul.u32 4, %s20
          %p426 = scmp.lt.s32.totalorder %s425, 7
          %s427 = scalar_select %p426, %s425, 7
          %s428 = smul.addr %s427, 8
          %s429 = scalar_lea.vmem %s3, %s428
        $region90: #{tpu_custom_call.1} parent=85 // pred_fallthru
          _
      $region86: #{tpu_custom_call.1} parent=5 // pred_fallthru
        _
    $region6: #{tpu_custom_call.1} parent=1 // loop_footer
      %s13 = sadd.s32 1, %s9
    $region7: #{tpu_custom_call.1} parent=1 // loop_footer_branch
      %8 = sbr.rel target = $region3
    $region8: #{tpu_custom_call.1} parent=1 // loop_exit
      _

</llo_original>
